<compile_context>
chip_gen: v6e
topology: v6e:2x2x1
jax: 0.10.0
libtpu: 0.0.40
codegen_flags: <defaults>
</compile_context>

<pallas_src>
import math
import jax
import jax.numpy as jnp
from jax import lax
from jax.experimental import pallas as pl
from jax.experimental.pallas import tpu as pltpu


def single_target_kernel(x_ref, w1_ref, b1_ref, w2_ref, b2_ref, w3_ref,
                         b3_ref, o_ref):
    """Fused MLP trunk (2x Linear+ReLU) + linear regression head.

    x_ref : [tile_b, D_in] bf16 (VMEM)   w1_ref: [H1, D_in] bf16
    b1_ref: [H1, 1] f32                  w2_ref: [H2, H1]  bf16
    b2_ref: [H2, 1] f32                  w3_ref: [H2, 1]   f32
    b3_ref: (1,) f32 (SMEM scalar)       o_ref : [1, tile_b] f32 (lane-dense)
    """
    # Dense_1 -> ReLU_1 (-> Drop_1, identity at inference).
    # Contract the feature axis of both operands so the result is [H1, tile_b]
    # (batch on lanes) without any explicit transpose of x.
    h = lax.dot_general(
        w1_ref[...], x_ref[...],
        dimension_numbers=(((1,), (1,)), ((), ())),
        preferred_element_type=jnp.float32)                     # [H1, tile_b]
    h = jnp.maximum(h + b1_ref[...], 0.0)

    # Dense_2 -> ReLU_2 (-> Drop_2, identity at inference).
    h = jnp.dot(w2_ref[...], h.astype(jnp.bfloat16),
                preferred_element_type=jnp.float32)             # [H2, tile_b]
    h = jnp.maximum(h + b2_ref[...], 0.0)

    # Regression head Linear(H2, 1): VPU multiply + sublane (XLU) reduce
    # instead of an N=1 MXU matmul; result is a lane-dense [1, tile_b] row.
    o = jnp.sum(h * w3_ref[...], axis=0, keepdims=True) + b3_ref[0]
    o_ref[...] = o


def single_target_forward(x, params, *, tile_b=512):
    """x: [B, D_in] (float32 or bfloat16) -> predictions: [B] float32."""
    (w1, b1), (w2, b2), (w3, b3) = params
    B, D_in = x.shape
    H1 = w1.shape[0]
    H2 = w2.shape[0]

    # Stream x as bf16 (the kernel is HBM-bandwidth bound on x); no-op if the
    # caller already stores activations in bf16.
    if x.dtype != jnp.bfloat16:
        x = x.astype(jnp.bfloat16)

    # Pad ragged batches to a multiple of tile_b instead of asserting.
    grid_b = pl.cdiv(B, tile_b)
    b_pad = grid_b * tile_b
    if b_pad != B:
        x = jnp.pad(x, ((0, b_pad - B), (0, 0)))

    out = pl.pallas_call(
        single_target_kernel,
        out_shape=jax.ShapeDtypeStruct((1, b_pad), jnp.float32),
        grid=(grid_b,),
        in_specs=[
            # x tile: only operand that advances with the grid.
            pl.BlockSpec((tile_b, D_in), lambda i: (i, 0)),
            # Weights/biases: constant block index -> resident in VMEM.
            pl.BlockSpec((H1, D_in), lambda i: (0, 0)),
            pl.BlockSpec((H1, 1), lambda i: (0, 0)),
            pl.BlockSpec((H2, H1), lambda i: (0, 0)),
            pl.BlockSpec((H2, 1), lambda i: (0, 0)),
            pl.BlockSpec((H2, 1), lambda i: (0, 0)),
            # Scalar head bias: SMEM, untiled.
            pl.BlockSpec(memory_space=pltpu.MemorySpace.SMEM),
        ],
        out_specs=pl.BlockSpec((1, tile_b), lambda i: (0, i)),
        compiler_params=pltpu.CompilerParams(
            dimension_semantics=("parallel",)),
    )(x, w1, b1, w2, b2, w3, b3)

    # Equivalent of PyTorch's .squeeze() on the [B, 1] head output (drop the
    # padded tail and the leading size-1 row) -> shape [B].
    return out[0, :B]


def init_params(key, input_size, hidden_size):
    """Deterministic init mirroring the module's _initialize_weights / defaults.

    MLPNet Linears: kaiming_uniform_(relu) -> U(-sqrt(6/fan_in), sqrt(6/fan_in)),
                    bias = 0.  Stored PyTorch-native [out, in], in bfloat16.
    Head Linear   : PyTorch default U(-1/sqrt(fan_in), 1/sqrt(fan_in)) for W & b,
                    stored as [H2, 1] (transposed) f32; bias as shape (1,) f32.
    """
    params = []
    dims = [input_size] + list(hidden_size)
    for i in range(len(hidden_size)):
        key, kw = jax.random.split(key)
        fan_in, fan_out = dims[i], dims[i + 1]
        bound = math.sqrt(6.0 / fan_in)  # kaiming uniform, gain=sqrt(2)
        w = jax.random.uniform(kw, (fan_out, fan_in), jnp.float32,
                               minval=-bound, maxval=bound).astype(jnp.bfloat16)
        b = jnp.zeros((fan_out, 1), jnp.float32)
        params.append((w, b))
    # regression head: Linear(hidden_size[-1], 1), PyTorch default init
    key, kw, kb = jax.random.split(key, 3)
    fan_in = hidden_size[-1]
    bound = 1.0 / math.sqrt(fan_in)
    w3 = jax.random.uniform(kw, (fan_in, 1), jnp.float32,
                            minval=-bound, maxval=bound)
    b3 = jax.random.uniform(kb, (1,), jnp.float32,
                            minval=-bound, maxval=bound)
    params.append((w3, b3))
    return params


def reference_forward(x, params):
    """Pure-JAX reference with the same bf16 operand rounding as the kernel."""
    (w1, b1), (w2, b2), (w3, b3) = params
    f32 = jnp.float32
    h = x.astype(f32) @ w1.astype(f32).T + b1[:, 0]          # [B, H1]
    h = jnp.maximum(h, 0.0)
    h = h.astype(jnp.bfloat16).astype(f32) @ w2.astype(f32).T + b2[:, 0]
    h = jnp.maximum(h, 0.0)                                   # [B, H2]
    return jnp.sum(h * w3[:, 0], axis=1) + b3[0]              # [B]


if __name__ == "__main__":
    # SingleTargetNetwork(input_size=32, hidden_size=[64, 32],
    #                     dropout_rate=0.1, act_fn='ReLU', bn=False,
    #                     head_hidden_size=None)
    input_size = 32
    hidden_size = [64, 32]
    batch = 300      # deliberately not a multiple of tile_b (wrapper pads)
    tile_b = 256     # multiple of 256 (v6e/v7x MXU width); grid = 2 steps

    key = jax.random.PRNGKey(0)
    key, kx = jax.random.split(key)
    # Activations stored in bf16 (the bandwidth-relevant layout upstream).
    x = jax.random.normal(kx, (batch, input_size), jnp.float32).astype(
        jnp.bfloat16)

    params = init_params(key, input_size, hidden_size)

    preds = single_target_forward(x, params, tile_b=tile_b)
    preds = jax.block_until_ready(preds)

    ref = reference_forward(x, params)
    assert preds.shape == (batch,)
    assert jnp.allclose(preds, ref, atol=1e-3, rtol=1e-3), float(
        jnp.max(jnp.abs(preds - ref)))

    print("KERNEL_OK")
</pallas_src>

<mosaic_0001>
module attributes {stable_mosaic.version = 11 : i64} {
  func.func @single_target_kernel(%arg0: i32, %arg1: memref<256x32xbf16, #tpu.memory_space<vmem>>, %arg2: memref<64x32xbf16, #tpu.memory_space<vmem>>, %arg3: memref<64x1xf32, #tpu.memory_space<vmem>>, %arg4: memref<32x64xbf16, #tpu.memory_space<vmem>>, %arg5: memref<32x1xf32, #tpu.memory_space<vmem>>, %arg6: memref<32x1xf32, #tpu.memory_space<vmem>>, %arg7: memref<1xf32, #tpu.memory_space<smem>>, %arg8: memref<1x256xf32, #tpu.memory_space<vmem>>) attributes {dimension_semantics = [#tpu.dimension_semantics<parallel>], iteration_bounds = array<i64: 2>, scalar_prefetch = 0 : i64, scratch_operands = 0 : i64, tpu.core_type = #tpu.core_type<tc>, window_params = [{transform_indices = @transform_0, window_bounds = array<i64: 256, 32>}, {pipeline_mode = #tpu.pipeline_mode<synchronous>, transform_indices = @transform_1, window_bounds = array<i64: 64, 32>}, {pipeline_mode = #tpu.pipeline_mode<synchronous>, transform_indices = @transform_2, window_bounds = array<i64: 64, 1>}, {pipeline_mode = #tpu.pipeline_mode<synchronous>, transform_indices = @transform_3, window_bounds = array<i64: 32, 64>}, {pipeline_mode = #tpu.pipeline_mode<synchronous>, transform_indices = @transform_4, window_bounds = array<i64: 32, 1>}, {pipeline_mode = #tpu.pipeline_mode<synchronous>, transform_indices = @transform_5, window_bounds = array<i64: 32, 1>}, {transform_indices = @transform_6, window_bounds = array<i64: 1>}, {transform_indices = @transform_7, window_bounds = array<i64: 1, 256>}]} {
    %c0 = arith.constant 0 : index
    %c0_0 = arith.constant 0 : index
    %0 = vector.load %arg2[%c0, %c0_0] : memref<64x32xbf16, #tpu.memory_space<vmem>>, vector<64x32xbf16>
    %c0_1 = arith.constant 0 : index
    %c0_2 = arith.constant 0 : index
    %1 = vector.load %arg1[%c0_1, %c0_2] : memref<256x32xbf16, #tpu.memory_space<vmem>>, vector<256x32xbf16>
    %cst = arith.constant dense<0.000000e+00> : vector<64x256xf32>
    %2 = tpu.matmul %0, %1, %cst {dimension_numbers = #tpu.dot_dimension_numbers<[1], [1], [0], [0], [0, 0, 1, 0], [], []>} : vector<64x32xbf16>, vector<256x32xbf16>, vector<64x256xf32> -> vector<64x256xf32>
    %c0_3 = arith.constant 0 : index
    %c0_4 = arith.constant 0 : index
    %3 = vector.load %arg3[%c0_3, %c0_4] : memref<64x1xf32, #tpu.memory_space<vmem>>, vector<64x1xf32>
    %4 = vector.broadcast %3 : vector<64x1xf32> to vector<64x256xf32>
    %5 = arith.addf %2, %4 : vector<64x256xf32>
    %cst_5 = arith.constant 0.000000e+00 : f32
    %6 = vector.broadcast %cst_5 : f32 to vector<64x256xf32>
    %7 = arith.maximumf %5, %6 : vector<64x256xf32>
    %c0_6 = arith.constant 0 : index
    %c0_7 = arith.constant 0 : index
    %8 = vector.load %arg4[%c0_6, %c0_7] : memref<32x64xbf16, #tpu.memory_space<vmem>>, vector<32x64xbf16>
    %9 = arith.truncf %7 : vector<64x256xf32> to vector<64x256xbf16>
    %cst_8 = arith.constant dense<0.000000e+00> : vector<32x256xf32>
    %10 = tpu.matmul %8, %9, %cst_8 {dimension_numbers = #tpu.dot_dimension_numbers<[1], [0], [0], [1], [0, 0, 1, 1], [], []>} : vector<32x64xbf16>, vector<64x256xbf16>, vector<32x256xf32> -> vector<32x256xf32>
    %c0_9 = arith.constant 0 : index
    %c0_10 = arith.constant 0 : index
    %11 = vector.load %arg5[%c0_9, %c0_10] : memref<32x1xf32, #tpu.memory_space<vmem>>, vector<32x1xf32>
    %12 = vector.broadcast %11 : vector<32x1xf32> to vector<32x256xf32>
    %13 = arith.addf %10, %12 : vector<32x256xf32>
    %cst_11 = arith.constant 0.000000e+00 : f32
    %14 = vector.broadcast %cst_11 : f32 to vector<32x256xf32>
    %15 = arith.maximumf %13, %14 : vector<32x256xf32>
    %c0_12 = arith.constant 0 : index
    %c0_13 = arith.constant 0 : index
    %16 = vector.load %arg6[%c0_12, %c0_13] : memref<32x1xf32, #tpu.memory_space<vmem>>, vector<32x1xf32>
    %17 = vector.broadcast %16 : vector<32x1xf32> to vector<32x256xf32>
    %18 = arith.mulf %15, %17 : vector<32x256xf32>
    %cst_14 = arith.constant dense<0.000000e+00> : vector<256xf32>
    %19 = vector.multi_reduction <add>, %18, %cst_14 [0] : vector<32x256xf32> to vector<256xf32>
    %20 = vector.shape_cast %19 : vector<256xf32> to vector<1x256xf32>
    %c0_15 = arith.constant 0 : index
    %21 = memref.load %arg7[%c0_15] : memref<1xf32, #tpu.memory_space<smem>>
    %22 = vector.broadcast %21 : f32 to vector<1x256xf32>
    %23 = arith.addf %20, %22 : vector<1x256xf32>
    %c0_16 = arith.constant 0 : index
    %c0_17 = arith.constant 0 : index
    %24 = vector.load %arg8[%c0_16, %c0_17] : memref<1x256xf32, #tpu.memory_space<vmem>>, vector<1x256xf32>
    tpu.vector_store %arg8[%c0_16, %c0_17], %23 {strides = array<i32>} : memref<1x256xf32, #tpu.memory_space<vmem>>, vector<1x256xf32>,
    return
  }
  func.func @transform_0(%arg0: i32) -> (i32, i32) {
    %c0_i32 = arith.constant 0 : i32
    %c0_i32_0 = arith.constant 0 : i32
    return %arg0, %c0_i32 : i32, i32
  }
  func.func @transform_1(%arg0: i32) -> (i32, i32) {
    %c0_i32 = arith.constant 0 : i32
    %c0_i32_0 = arith.constant 0 : i32
    %c0_i32_1 = arith.constant 0 : i32
    return %c0_i32, %c0_i32_0 : i32, i32
  }
  func.func @transform_2(%arg0: i32) -> (i32, i32) {
    %c0_i32 = arith.constant 0 : i32
    %c0_i32_0 = arith.constant 0 : i32
    %c0_i32_1 = arith.constant 0 : i32
    return %c0_i32, %c0_i32_0 : i32, i32
  }
  func.func @transform_3(%arg0: i32) -> (i32, i32) {
    %c0_i32 = arith.constant 0 : i32
    %c0_i32_0 = arith.constant 0 : i32
    %c0_i32_1 = arith.constant 0 : i32
    return %c0_i32, %c0_i32_0 : i32, i32
  }
  func.func @transform_4(%arg0: i32) -> (i32, i32) {
    %c0_i32 = arith.constant 0 : i32
    %c0_i32_0 = arith.constant 0 : i32
    %c0_i32_1 = arith.constant 0 : i32
    return %c0_i32, %c0_i32_0 : i32, i32
  }
  func.func @transform_5(%arg0: i32) -> (i32, i32) {
    %c0_i32 = arith.constant 0 : i32
    %c0_i32_0 = arith.constant 0 : i32
    %c0_i32_1 = arith.constant 0 : i32
    return %c0_i32, %c0_i32_0 : i32, i32
  }
  func.func @transform_6(%arg0: i32) -> i32 {
    %c0_i32 = arith.constant 0 : i32
    %c0_i32_0 = arith.constant 0 : i32
    return %c0_i32 : i32
  }
  func.func @transform_7(%arg0: i32) -> (i32, i32) {
    %c0_i32 = arith.constant 0 : i32
    %c0_i32_0 = arith.constant 0 : i32
    return %c0_i32, %arg0 : i32, i32
  }
}

</mosaic_0001>

<llo_original>
// kernel: tpu_custom_call.1
$region0: #{tpu_custom_call.1}
  #allocation0 [shape = 'u32[]', space=smem, size = 0x4, offset = 0x4, fixed_abs, tag = 'smem constant byte address 0x4 - core index']
  #allocation1 [shape = 'u32[144,128]{1,0:T(1,128)}', space=vmem, size = 0x12000, scoped, tag = 'internal scratch']
  #allocation2 [shape = 'f32[1]{0:T(128)S(6)}', space=smem, size = 0x200, scoped, tag = 'scoped memory for tpu_custom_call.1']
  %s0 = inlined_call_operand.vmem [shape: bf16[512,32], index: 0, kind: input, shape index: {}]
  %s1 = inlined_call_operand.vmem [shape: bf16[64,32], index: 1, kind: input, shape index: {}]
  %s2 = inlined_call_operand.vmem [shape: f32[64,1], index: 2, kind: input, shape index: {}]
  %s3 = inlined_call_operand.vmem [shape: bf16[32,64], index: 3, kind: input, shape index: {}]
  %s4 = inlined_call_operand.vmem [shape: f32[32,1], index: 4, kind: input, shape index: {}]
  %s5 = inlined_call_operand.vmem [shape: f32[32,1], index: 5, kind: input, shape index: {}]
  %s6 = inlined_call_operand.<no memory space> [shape: f32[1], index: 6, kind: input, shape index: {}]
  %s7 = inlined_call_operand.hbm [shape: f32[1,512], index: 7, kind: output, shape index: {}]
  %s8 = sld [smem:[#allocation0]]
  $region61: #{tpu_custom_call.1} parent=0
    _
  %s10 = ssub.s32 1, %s8
  %s11 = scalar_select 0, %s10, %s8
  %12 = sst [smem:[#allocation2]] %s6
  $region1: #{tpu_custom_call.1} parent=0
    #allocation3 [shape = 'u8[2048]{0}', space=vmem, size = 0x800, scoped, tag = 'output window, operand 0']
    #allocation4 [shape = 's32[2]{0}', space=sflag, size = 0x8, scoped, tag = 'scoped memory for tpu_custom_call.1']
    %13 = vsyncpa [#allocation4], 0
    %s14 = scalar_lea.sflag [#allocation4], 1
    %15 = vsyncpa %s14, 0
    loop: start=0, step=1, limit=4
    $region2: #{tpu_custom_call.1} parent=1 // loop_pre_header
      _
    $region3: #{tpu_custom_call.1} parent=1 // loop_header
      %s17 = sphi 0, %s21
      %p18 = scmp.ge.s32.totalorder %s17, 4
      %s27 = sphi 0, %s29
      %s30 = sphi 0, %s27
      %s31 = sphi 0, %s30
      %s47 = sphi 0, %s31
      %s51 = sphi 0, %s51
      %s53 = sphi 0, %s51
      %s54 = sphi 0, %s53
      %s68 = sphi 0, %s54
      %s72 = sphi 0, %s72
      %s74 = sphi 0, %s72
      %s75 = sphi 0, %s74
      %s89 = sphi 0, %s75
      %s93 = sphi 0, %s93
      %s95 = sphi 0, %s93
      %s96 = sphi 0, %s95
      %s110 = sphi 0, %s96
      %s114 = sphi 0, %s114
      %s116 = sphi 0, %s114
      %s117 = sphi 0, %s116
      %s131 = sphi 0, %s117
      %s135 = sphi 0, %s135
      %s137 = sphi 0, %s135
      %s138 = sphi 0, %s137
      %s152 = sphi 0, %s138
      %s156 = sphi 0, %s156
      %s158 = sphi 0, %s156
      %s159 = sphi 0, %s158
      %s173 = sphi 0, %s159
      %s179 = sphi 0, %s181
      %s182 = sphi 0, %s179
      %s183 = sphi 0, %s182
      %s199 = sphi 0, %s183
    $region4: #{tpu_custom_call.1} parent=1 // loop_header_branch
      %20 = sbr.rel (%p18) target = $region8
    $region5: #{tpu_custom_call.1} parent=1 // loop_body
      %s22 = ssub.s32 %s17, 1
      %s23 = ssub.s32 %s17, 2
      %s24 = sadd.s32 %s17, 1
      %s25 = ssub.s32 %s17, %s24
      %p26 = scmp.eq.s32.totalorder %s25, 0
      %s28 = sadd.s32 %s27, 1
      %s29 = scalar_select %p26, %s27, %s28
      %p32 = pneg %p26
      %p33 = scmp.eq.s32.totalorder %s17, 1
      %p34 = por %p32, %p33
      %p35 = scmp.ne.s32.totalorder %s27, %s30
      %p36 = scmp.eq.s32.totalorder %s17, 0
      %p37 = por %p35, %p36
      %p38 = scmp.ne.s32.totalorder %s27, %s30
      %p39 = scmp.eq.s32.totalorder %s22, 1
      %p40 = por %p38, %p39
      %p41 = scmp.ne.s32.totalorder %s30, %s31
      %p42 = scmp.eq.s32.totalorder %s22, 0
      %p43 = por %p41, %p42
      %p44 = scmp.ne.s32.totalorder %s30, %s31
      %p45 = scmp.eq.s32.totalorder %s23, 1
      %p46 = por %p44, %p45
      %p48 = scmp.ne.s32.totalorder %s31, %s47
      %p49 = scmp.eq.s32.totalorder %s23, 0
      %p50 = por %p48, %p49
      %s52 = sadd.s32 %s51, 1
      %p55 = scmp.eq.s32.totalorder %s17, 1
      %p56 = scmp.ne.s32.totalorder %s51, %s53
      %p57 = scmp.eq.s32.totalorder %s17, 0
      %p58 = por %p56, %p57
      %p59 = scmp.ne.s32.totalorder %s51, %s53
      %p60 = scmp.eq.s32.totalorder %s22, 1
      %p61 = por %p59, %p60
      %p62 = scmp.ne.s32.totalorder %s53, %s54
      %p63 = scmp.eq.s32.totalorder %s22, 0
      %p64 = por %p62, %p63
      %p65 = scmp.ne.s32.totalorder %s53, %s54
      %p66 = scmp.eq.s32.totalorder %s23, 1
      %p67 = por %p65, %p66
      %p69 = scmp.ne.s32.totalorder %s54, %s68
      %p70 = scmp.eq.s32.totalorder %s23, 0
      %p71 = por %p69, %p70
      %s73 = sadd.s32 %s72, 1
      %p76 = scmp.eq.s32.totalorder %s17, 1
      %p77 = scmp.ne.s32.totalorder %s72, %s74
      %p78 = scmp.eq.s32.totalorder %s17, 0
      %p79 = por %p77, %p78
      %p80 = scmp.ne.s32.totalorder %s72, %s74
      %p81 = scmp.eq.s32.totalorder %s22, 1
      %p82 = por %p80, %p81
      %p83 = scmp.ne.s32.totalorder %s74, %s75
      %p84 = scmp.eq.s32.totalorder %s22, 0
      %p85 = por %p83, %p84
      %p86 = scmp.ne.s32.totalorder %s74, %s75
      %p87 = scmp.eq.s32.totalorder %s23, 1
      %p88 = por %p86, %p87
      %p90 = scmp.ne.s32.totalorder %s75, %s89
      %p91 = scmp.eq.s32.totalorder %s23, 0
      %p92 = por %p90, %p91
      %s94 = sadd.s32 %s93, 1
      %p97 = scmp.eq.s32.totalorder %s17, 1
      %p98 = scmp.ne.s32.totalorder %s93, %s95
      %p99 = scmp.eq.s32.totalorder %s17, 0
      %p100 = por %p98, %p99
      %p101 = scmp.ne.s32.totalorder %s93, %s95
      %p102 = scmp.eq.s32.totalorder %s22, 1
      %p103 = por %p101, %p102
      %p104 = scmp.ne.s32.totalorder %s95, %s96
      %p105 = scmp.eq.s32.totalorder %s22, 0
      %p106 = por %p104, %p105
      %p107 = scmp.ne.s32.totalorder %s95, %s96
      %p108 = scmp.eq.s32.totalorder %s23, 1
      %p109 = por %p107, %p108
      %p111 = scmp.ne.s32.totalorder %s96, %s110
      %p112 = scmp.eq.s32.totalorder %s23, 0
      %p113 = por %p111, %p112
      %s115 = sadd.s32 %s114, 1
      %p118 = scmp.eq.s32.totalorder %s17, 1
      %p119 = scmp.ne.s32.totalorder %s114, %s116
      %p120 = scmp.eq.s32.totalorder %s17, 0
      %p121 = por %p119, %p120
      %p122 = scmp.ne.s32.totalorder %s114, %s116
      %p123 = scmp.eq.s32.totalorder %s22, 1
      %p124 = por %p122, %p123
      %p125 = scmp.ne.s32.totalorder %s116, %s117
      %p126 = scmp.eq.s32.totalorder %s22, 0
      %p127 = por %p125, %p126
      %p128 = scmp.ne.s32.totalorder %s116, %s117
      %p129 = scmp.eq.s32.totalorder %s23, 1
      %p130 = por %p128, %p129
      %p132 = scmp.ne.s32.totalorder %s117, %s131
      %p133 = scmp.eq.s32.totalorder %s23, 0
      %p134 = por %p132, %p133
      %s136 = sadd.s32 %s135, 1
      %p139 = scmp.eq.s32.totalorder %s17, 1
      %p140 = scmp.ne.s32.totalorder %s135, %s137
      %p141 = scmp.eq.s32.totalorder %s17, 0
      %p142 = por %p140, %p141
      %p143 = scmp.ne.s32.totalorder %s135, %s137
      %p144 = scmp.eq.s32.totalorder %s22, 1
      %p145 = por %p143, %p144
      %p146 = scmp.ne.s32.totalorder %s137, %s138
      %p147 = scmp.eq.s32.totalorder %s22, 0
      %p148 = por %p146, %p147
      %p149 = scmp.ne.s32.totalorder %s137, %s138
      %p150 = scmp.eq.s32.totalorder %s23, 1
      %p151 = por %p149, %p150
      %p153 = scmp.ne.s32.totalorder %s138, %s152
      %p154 = scmp.eq.s32.totalorder %s23, 0
      %p155 = por %p153, %p154
      %s157 = sadd.s32 %s156, 1
      %p160 = scmp.eq.s32.totalorder %s17, 1
      %p161 = scmp.ne.s32.totalorder %s156, %s158
      %p162 = scmp.eq.s32.totalorder %s17, 0
      %p163 = por %p161, %p162
      %p164 = scmp.ne.s32.totalorder %s156, %s158
      %p165 = scmp.eq.s32.totalorder %s22, 1
      %p166 = por %p164, %p165
      %p167 = scmp.ne.s32.totalorder %s158, %s159
      %p168 = scmp.eq.s32.totalorder %s22, 0
      %p169 = por %p167, %p168
      %p170 = scmp.ne.s32.totalorder %s158, %s159
      %p171 = scmp.eq.s32.totalorder %s23, 1
      %p172 = por %p170, %p171
      %p174 = scmp.ne.s32.totalorder %s159, %s173
      %p175 = scmp.eq.s32.totalorder %s23, 0
      %p176 = por %p174, %p175
      %s177 = ssub.s32 %s17, %s24
      %p178 = scmp.eq.s32.totalorder %s177, 0
      %s180 = sadd.s32 %s179, 1
      %s181 = scalar_select %p178, %s179, %s180
      %p184 = pneg %p178
      %p185 = scmp.eq.s32.totalorder %s17, 1
      %p186 = por %p184, %p185
      %p187 = scmp.ne.s32.totalorder %s179, %s182
      %p188 = scmp.eq.s32.totalorder %s17, 0
      %p189 = por %p187, %p188
      %p190 = scmp.ne.s32.totalorder %s179, %s182
      %p191 = scmp.eq.s32.totalorder %s22, 1
      %p192 = por %p190, %p191
      %p193 = scmp.ne.s32.totalorder %s182, %s183
      %p194 = scmp.eq.s32.totalorder %s22, 0
      %p195 = por %p193, %p194
      %p196 = scmp.ne.s32.totalorder %s182, %s183
      %p197 = scmp.eq.s32.totalorder %s23, 1
      %p198 = por %p196, %p197
      %p200 = scmp.ne.s32.totalorder %s183, %s199
      %p201 = scmp.eq.s32.totalorder %s23, 0
      %p202 = por %p200, %p201
      %p203 = scmp.le.s32.totalorder 1, %s17
      %p204 = scmp.lt.s32.totalorder %s17, 3
      %p205 = pnand %p203, %p204
      %p206 = pneg %p205
      // Predicated region
      $region9: #{tpu_custom_call.1} parent=5 // pred_check
        _
      $region10: #{tpu_custom_call.1} parent=5 // pred_check_branch
        %208 = sbr.rel (%p205) target = $region12
      $region11: #{tpu_custom_call.1} parent=5 // pred_region
        %s209 = ssub.s32 %s17, 1
        // Predicated region
        $region13: #{tpu_custom_call.1} parent=11 // pred_check
          %p210 = pneg %p64
        $region14: #{tpu_custom_call.1} parent=11 // pred_check_branch
          %212 = sbr.rel (%p210) target = $region16
        $region15: #{tpu_custom_call.1} parent=11 // pred_region
          _
        $region16: #{tpu_custom_call.1} parent=11 // pred_fallthru
          _
        // Predicated region
        $region17: #{tpu_custom_call.1} parent=11 // pred_check
          %p213 = pneg %p85
        $region18: #{tpu_custom_call.1} parent=11 // pred_check_branch
          %215 = sbr.rel (%p213) target = $region20
        $region19: #{tpu_custom_call.1} parent=11 // pred_region
          _
        $region20: #{tpu_custom_call.1} parent=11 // pred_fallthru
          _
        // Predicated region
        $region21: #{tpu_custom_call.1} parent=11 // pred_check
          %p216 = pneg %p106
        $region22: #{tpu_custom_call.1} parent=11 // pred_check_branch
          %218 = sbr.rel (%p216) target = $region24
        $region23: #{tpu_custom_call.1} parent=11 // pred_region
          _
        $region24: #{tpu_custom_call.1} parent=11 // pred_fallthru
          _
        // Predicated region
        $region25: #{tpu_custom_call.1} parent=11 // pred_check
          %p219 = pneg %p127
        $region26: #{tpu_custom_call.1} parent=11 // pred_check_branch
          %221 = sbr.rel (%p219) target = $region28
        $region27: #{tpu_custom_call.1} parent=11 // pred_region
          _
        $region28: #{tpu_custom_call.1} parent=11 // pred_fallthru
          _
        // Predicated region
        $region29: #{tpu_custom_call.1} parent=11 // pred_check
          %p222 = pneg %p148
        $region30: #{tpu_custom_call.1} parent=11 // pred_check_branch
          %224 = sbr.rel (%p222) target = $region32
        $region31: #{tpu_custom_call.1} parent=11 // pred_region
          _
        $region32: #{tpu_custom_call.1} parent=11 // pred_fallthru
          _
        // Predicated region
        $region33: #{tpu_custom_call.1} parent=11 // pred_check
          %p225 = pneg %p169
        $region34: #{tpu_custom_call.1} parent=11 // pred_check_branch
          %227 = sbr.rel (%p225) target = $region36
        $region35: #{tpu_custom_call.1} parent=11 // pred_region
          _
        $region36: #{tpu_custom_call.1} parent=11 // pred_fallthru
          _
      $region12: #{tpu_custom_call.1} parent=5 // pred_fallthru
        _
      %p228 = scmp.lt.s32.totalorder %s17, 2
      // Predicated region
      $region37: #{tpu_custom_call.1} parent=5 // pred_check
        %p229 = pneg %p228
      $region38: #{tpu_custom_call.1} parent=5 // pred_check_branch
        %231 = sbr.rel (%p229) target = $region40
      $region39: #{tpu_custom_call.1} parent=5 // pred_region
        // Predicated region
        $region41: #{tpu_custom_call.1} parent=39 // pred_check
          %p232 = pneg %p37
        $region42: #{tpu_custom_call.1} parent=39 // pred_check_branch
          %234 = sbr.rel (%p232) target = $region44
        $region43: #{tpu_custom_call.1} parent=39 // pred_region
          %s235 = smul.u32 32, %s17
          %p236 = scmp.lt.s32.totalorder %s235, 63
          %s237 = scalar_select %p236, %s235, 63
          %s238 = smul.addr %s237, 4
          %s239 = scalar_lea.vmem %s0, %s238
          %s240 = smul.u32 32, %s17
        $region44: #{tpu_custom_call.1} parent=39 // pred_fallthru
          _
      $region40: #{tpu_custom_call.1} parent=5 // pred_fallthru
        _
      %p241 = scmp.le.s32.totalorder 1, %s17
      %p242 = scmp.lt.s32.totalorder %s17, 3
      %p243 = pnand %p241, %p242
      %p244 = pneg %p243
      // Predicated region
      $region45: #{tpu_custom_call.1} parent=5 // pred_check
        _
      $region46: #{tpu_custom_call.1} parent=5 // pred_check_branch
        %246 = sbr.rel (%p243) target = $region48
      $region47: #{tpu_custom_call.1} parent=5 // pred_region
        %s247 = ssub.s32 %s17, 1
        %s248 = smul.u32 32, %s22
        %p249 = scmp.lt.s32.totalorder %s248, 63
        %s250 = scalar_select %p249, %s248, 63
        %s251 = smul.addr %s250, 4
        %s252 = scalar_lea.vmem %s0, %s251
        %p253 = pneg %p43
        %p254 = pneg %p40
        %p255 = pneg %p64
        %p256 = pneg %p61
        %p257 = pneg %p85
        %p258 = pneg %p82
        %p259 = pneg %p106
        %p260 = pneg %p103
        %p261 = pneg %p127
        %p262 = pneg %p124
        %p263 = pneg %p148
        %p264 = pneg %p145
        %p265 = pneg %p169
        %p266 = pneg %p166
        %p267 = pneg %p195
        %p268 = pneg %p192
        %s269 = sand.u32 %s182, 1
        %s270 = scalar_lea.sflag [#allocation4], %s269
        %s271 = sand.u32 %s182, 1
        %s272 = smul.addr %s271, 2
        %s273 = scalar_lea.vmem [#allocation3], %s272
        %s274 = smul.u32 32, %s22
        %p275 = scmp.lt.s32.totalorder %s274, 63
        %s276 = scalar_select %p275, %s274, 63
        %s277 = smul.addr %s276, 4
        %s278 = scalar_lea.vmem %s0, %s277
        %s279 = smul.u32 32, %s22
        %s280 = smul.u32 2, %s22
        %v282 = vld [vmem:[%s1] sm:$0xf]
        %v283 = vld [vmem:[%s1 + $0x4] sm:$0xf]
        %v284 = vld [vmem:[%s1 + $0x8] sm:$0xf]
        %v285 = vld [vmem:[%s1 + $0xc] sm:$0xf]
        %v286 = vld [vmem:[%s1 + $0x10] sm:$0xf]
        %v287 = vld [vmem:[%s1 + $0x14] sm:$0xf]
        %v288 = vld [vmem:[%s1 + $0x18] sm:$0xf]
        %v289 = vld [vmem:[%s1 + $0x1c] sm:$0xf]
        %v290 = vld [vmem:[%s278] sm:$0xf]
        %v291 = vld [vmem:[%s278 + $0x4] sm:$0xf]
        %v292 = vld [vmem:[%s278 + $0x8] sm:$0xf]
        %v293 = vld [vmem:[%s278 + $0xc] sm:$0xf]
        %v294 = vld [vmem:[%s278 + $0x10] sm:$0xf]
        %v295 = vld [vmem:[%s278 + $0x14] sm:$0xf]
        %v296 = vld [vmem:[%s278 + $0x18] sm:$0xf]
        %v297 = vld [vmem:[%s278 + $0x1c] sm:$0xf]
        %v298 = vld [vmem:[%s278 + $0x20] sm:$0xf]
        %v299 = vld [vmem:[%s278 + $0x24] sm:$0xf]
        %v300 = vld [vmem:[%s278 + $0x28] sm:$0xf]
        %v301 = vld [vmem:[%s278 + $0x2c] sm:$0xf]
        %v302 = vld [vmem:[%s278 + $0x30] sm:$0xf]
        %v303 = vld [vmem:[%s278 + $0x34] sm:$0xf]
        %v304 = vld [vmem:[%s278 + $0x38] sm:$0xf]
        %v305 = vld [vmem:[%s278 + $0x3c] sm:$0xf]
        %v306 = vld [vmem:[%s278 + $0x40] sm:$0xf]
        %v307 = vld [vmem:[%s278 + $0x44] sm:$0xf]
        %v308 = vld [vmem:[%s278 + $0x48] sm:$0xf]
        %v309 = vld [vmem:[%s278 + $0x4c] sm:$0xf]
        %v310 = vld [vmem:[%s278 + $0x50] sm:$0xf]
        %v311 = vld [vmem:[%s278 + $0x54] sm:$0xf]
        %v312 = vld [vmem:[%s278 + $0x58] sm:$0xf]
        %v313 = vld [vmem:[%s278 + $0x5c] sm:$0xf]
        %v314 = vld [vmem:[%s278 + $0x60] sm:$0xf]
        %v315 = vld [vmem:[%s278 + $0x64] sm:$0xf]
        %v316 = vld [vmem:[%s278 + $0x68] sm:$0xf]
        %v317 = vld [vmem:[%s278 + $0x6c] sm:$0xf]
        %v318 = vld [vmem:[%s278 + $0x70] sm:$0xf]
        %v319 = vld [vmem:[%s278 + $0x74] sm:$0xf]
        %v320 = vld [vmem:[%s278 + $0x78] sm:$0xf]
        %v321 = vld [vmem:[%s278 + $0x7c] sm:$0xf]
        %v322 = vld [vmem:[%s2] sm:$0xff]
        %v323 = vld [vmem:[%s2 + $0x8] sm:$0xff]
        %v324 = vld [vmem:[%s2 + $0x10] sm:$0xff]
        %v325 = vld [vmem:[%s2 + $0x18] sm:$0xff]
        %v326 = vld [vmem:[%s2 + $0x20] sm:$0xff]
        %v327 = vld [vmem:[%s2 + $0x28] sm:$0xff]
        %v328 = vld [vmem:[%s2 + $0x30] sm:$0xff]
        %v329 = vld [vmem:[%s2 + $0x38] sm:$0xff]
        %331 = vset.pattern.permute.xlu0 0
        %332 = vperm.xlu0 %331, %v322
        %v333 = vpop.permute.xlu0 %332
        %336 = vset.pattern.permute.xlu0 0
        %337 = vperm.xlu0 %336, %v323
        %v338 = vpop.permute.xlu0 %337
        %341 = vset.pattern.permute.xlu0 0
        %342 = vperm.xlu0 %341, %v324
        %v343 = vpop.permute.xlu0 %342
        %346 = vset.pattern.permute.xlu0 0
        %347 = vperm.xlu0 %346, %v325
        %v348 = vpop.permute.xlu0 %347
        %351 = vset.pattern.permute.xlu0 0
        %352 = vperm.xlu0 %351, %v326
        %v353 = vpop.permute.xlu0 %352
        %356 = vset.pattern.permute.xlu0 0
        %357 = vperm.xlu0 %356, %v327
        %v358 = vpop.permute.xlu0 %357
        %361 = vset.pattern.permute.xlu0 0
        %362 = vperm.xlu0 %361, %v328
        %v363 = vpop.permute.xlu0 %362
        %366 = vset.pattern.permute.xlu0 0
        %367 = vperm.xlu0 %366, %v329
        %v368 = vpop.permute.xlu0 %367
        %v378 = vunpack.c.l.b16 %v282
        %v379 = vunpack.c.l.b16 %v283
        %v380 = vunpack.c.l.b16 %v284
        %v381 = vunpack.c.l.b16 %v285
        %v382 = vunpack.c.l.b16 %v286
        %v383 = vunpack.c.l.b16 %v287
        %v384 = vunpack.c.l.b16 %v288
        %v385 = vunpack.c.l.b16 %v289
        %v386 = vpack.c.b16 %v379, %v378
        %v387 = vpack.c.b16 %v381, %v380
        %v388 = vpack.c.b16 %v383, %v382
        %v389 = vpack.c.b16 %v385, %v384
        %v422 = vunpack.c.l.b16 %v290
        %v423 = vunpack.c.l.b16 %v291
        %v424 = vunpack.c.l.b16 %v292
        %v425 = vunpack.c.l.b16 %v293
        %v426 = vunpack.c.l.b16 %v294
        %v427 = vunpack.c.l.b16 %v295
        %v428 = vunpack.c.l.b16 %v296
        %v429 = vunpack.c.l.b16 %v297
        %v430 = vunpack.c.l.b16 %v298
        %v431 = vunpack.c.l.b16 %v299
        %v432 = vunpack.c.l.b16 %v300
        %v433 = vunpack.c.l.b16 %v301
        %v434 = vunpack.c.l.b16 %v302
        %v435 = vunpack.c.l.b16 %v303
        %v436 = vunpack.c.l.b16 %v304
        %v437 = vunpack.c.l.b16 %v305
        %v438 = vunpack.c.l.b16 %v306
        %v439 = vunpack.c.l.b16 %v307
        %v440 = vunpack.c.l.b16 %v308
        %v441 = vunpack.c.l.b16 %v309
        %v442 = vunpack.c.l.b16 %v310
        %v443 = vunpack.c.l.b16 %v311
        %v444 = vunpack.c.l.b16 %v312
        %v445 = vunpack.c.l.b16 %v313
        %v446 = vunpack.c.l.b16 %v314
        %v447 = vunpack.c.l.b16 %v315
        %v448 = vunpack.c.l.b16 %v316
        %v449 = vunpack.c.l.b16 %v317
        %v450 = vunpack.c.l.b16 %v318
        %v451 = vunpack.c.l.b16 %v319
        %v452 = vunpack.c.l.b16 %v320
        %v453 = vunpack.c.l.b16 %v321
        %v454 = vpack.c.b16 %v423, %v422
        %v455 = vpack.c.b16 %v425, %v424
        %v456 = vpack.c.b16 %v427, %v426
        %v457 = vpack.c.b16 %v429, %v428
        %v458 = vpack.c.b16 %v431, %v430
        %v459 = vpack.c.b16 %v433, %v432
        %v460 = vpack.c.b16 %v435, %v434
        %v461 = vpack.c.b16 %v437, %v436
        %v462 = vpack.c.b16 %v439, %v438
        %v463 = vpack.c.b16 %v441, %v440
        %v464 = vpack.c.b16 %v443, %v442
        %v465 = vpack.c.b16 %v445, %v444
        %v466 = vpack.c.b16 %v447, %v446
        %v467 = vpack.c.b16 %v449, %v448
        %v468 = vpack.c.b16 %v451, %v450
        %v469 = vpack.c.b16 %v453, %v452
        %vm470 = vcmask 261120
        %v472 = vsel %vm470, %v386, 0
        %v475 = vsel %vm470, %v387, 0
        %v478 = vsel %vm470, %v388, 0
        %v481 = vsel %vm470, %v389, 0
        %v484 = vsel %vm470, %v454, 0
        %v487 = vsel %vm470, %v455, 0
        %v490 = vsel %vm470, %v456, 0
        %v493 = vsel %vm470, %v457, 0
        %v496 = vsel %vm470, %v458, 0
        %v499 = vsel %vm470, %v459, 0
        %v502 = vsel %vm470, %v460, 0
        %v505 = vsel %vm470, %v461, 0
        %v508 = vsel %vm470, %v462, 0
        %v511 = vsel %vm470, %v463, 0
        %v514 = vsel %vm470, %v464, 0
        %v517 = vsel %vm470, %v465, 0
        %v520 = vsel %vm470, %v466, 0
        %v523 = vsel %vm470, %v467, 0
        %v526 = vsel %vm470, %v468, 0
        %v529 = vsel %vm470, %v469, 0
        %531 = vmatprep.subr.bf16.mxu0 0
        %532 = vmatpush1.bf16.xpose.msra.mxu0 %v505
        %533 = vmatprep.subr.bf16.mxu0 0
        %534 = vmatpush1.bf16.xpose.msra.mxu0 %v502
        %535 = vmatprep.subr.bf16.mxu0 0
        %536 = vmatpush1.bf16.xpose.msra.mxu0 %v499
        %537 = vmatprep.subr.bf16.mxu0 0
        %538 = vmatpush1.bf16.xpose.msra.mxu0 %v496
        %539 = vmatprep.subr.bf16.mxu0 0
        %540 = vmatpush1.bf16.xpose.msra.mxu0 %v493
        %541 = vmatprep.subr.bf16.mxu0 0
        %542 = vmatpush1.bf16.xpose.msra.mxu0 %v490
        %543 = vmatprep.subr.bf16.mxu0 0
        %544 = vmatpush1.bf16.xpose.msra.mxu0 %v487
        %545 = vmatprep.subr.bf16.mxu0 0
        %546 = vmatpush1.bf16.xpose.msra.mxu0 %v484
        %547 = vmatprep.subr.bf16.mxu0 0
        %548 = vmatpush2.bf16.xpose.msra.mxu0 %v529
        %549 = vmatprep.subr.bf16.mxu0 0
        %550 = vmatpush2.bf16.xpose.msra.mxu0 %v526
        %551 = vmatprep.subr.bf16.mxu0 0
        %552 = vmatpush2.bf16.xpose.msra.mxu0 %v523
        %553 = vmatprep.subr.bf16.mxu0 0
        %554 = vmatpush2.bf16.xpose.msra.mxu0 %v520
        %555 = vmatprep.subr.bf16.mxu0 0
        %556 = vmatpush2.bf16.xpose.msra.mxu0 %v517
        %557 = vmatprep.subr.bf16.mxu0 0
        %558 = vmatpush2.bf16.xpose.msra.mxu0 %v514
        %559 = vmatprep.subr.bf16.mxu0 0
        %560 = vmatpush2.bf16.xpose.msra.mxu0 %v511
        %561 = vmatprep.subr.bf16.mxu0 0
        %562 = vmatpush2.bf16.xpose.msra.mxu0 %v508
        %563 = vmatprep.mubr.bf16.mxu0 0
        %564 = vmatmul.mubr.bf16.gmra.mxu0 %v472
        %v565 = vpop.f32.mrf.mxu0
        %v566 = vadd.f32 %v333, %v565
        %v567 = vpop.f32.mrf.mxu0
        %v568 = vadd.f32 %v333, %v567
        %v569 = vpop.f32.mrf.mxu0
        %v570 = vadd.f32 %v338, %v569
        %v571 = vpop.f32.mrf.mxu0
        %v572 = vadd.f32 %v338, %v571
        %573 = vmatprep.mubr.bf16.mxu0 0
        %574 = vmatmul.mubr.bf16.gmra.mxu0 %v475
        %v575 = vpop.f32.mrf.mxu0
        %v576 = vadd.f32 %v343, %v575
        %v577 = vpop.f32.mrf.mxu0
        %v578 = vadd.f32 %v343, %v577
        %v579 = vpop.f32.mrf.mxu0
        %v580 = vadd.f32 %v348, %v579
        %v581 = vpop.f32.mrf.mxu0
        %v582 = vadd.f32 %v348, %v581
        %583 = vmatprep.mubr.bf16.mxu0 0
        %584 = vmatmul.mubr.bf16.gmra.mxu0 %v478
        %v585 = vpop.f32.mrf.mxu0
        %v586 = vadd.f32 %v353, %v585
        %v587 = vpop.f32.mrf.mxu0
        %v588 = vadd.f32 %v353, %v587
        %v589 = vpop.f32.mrf.mxu0
        %v590 = vadd.f32 %v358, %v589
        %v591 = vpop.f32.mrf.mxu0
        %v592 = vadd.f32 %v358, %v591
        %593 = vmatprep.mubr.bf16.mxu0 0
        %594 = vmatmul.mubr.bf16.gmra.mxu0 %v481
        %v595 = vpop.f32.mrf.mxu0
        %v596 = vadd.f32 %v363, %v595
        %v597 = vpop.f32.mrf.mxu0
        %v598 = vadd.f32 %v363, %v597
        %v599 = vpop.f32.mrf.mxu0
        %v600 = vadd.f32 %v368, %v599
        %v601 = vpop.f32.mrf.mxu0
        %v602 = vadd.f32 %v368, %v601
        %603 = vdwg.mxu0
        %v604 = vmax.f32 %v566, 0.0
        %v605 = vmax.f32 %v568, 0.0
        %v606 = vmax.f32 %v570, 0.0
        %v607 = vmax.f32 %v572, 0.0
        %v608 = vmax.f32 %v576, 0.0
        %v609 = vmax.f32 %v578, 0.0
        %v610 = vmax.f32 %v580, 0.0
        %v611 = vmax.f32 %v582, 0.0
        %v612 = vmax.f32 %v586, 0.0
        %v613 = vmax.f32 %v588, 0.0
        %v614 = vmax.f32 %v590, 0.0
        %v615 = vmax.f32 %v592, 0.0
        %v616 = vmax.f32 %v596, 0.0
        %v617 = vmax.f32 %v598, 0.0
        %v618 = vmax.f32 %v600, 0.0
        %v619 = vmax.f32 %v602, 0.0
        %v620 = vld [vmem:[%s3] sm:$0xf]
        %v621 = vld [vmem:[%s3 + $0x4] sm:$0xf]
        %v622 = vld [vmem:[%s3 + $0x8] sm:$0xf]
        %v623 = vld [vmem:[%s3 + $0xc] sm:$0xf]
        %v624 = vpack.c.bf16 %v606, %v604
        %v625 = vpack.c.bf16 %v607, %v605
        %v626 = vpack.c.bf16 %v610, %v608
        %v627 = vpack.c.bf16 %v611, %v609
        %v628 = vpack.c.bf16 %v614, %v612
        %v629 = vpack.c.bf16 %v615, %v613
        %v630 = vpack.c.bf16 %v618, %v616
        %v631 = vpack.c.bf16 %v619, %v617
        %v632 = vld [vmem:[%s4] sm:$0xff]
        %v633 = vld [vmem:[%s4 + $0x8] sm:$0xff]
        %v634 = vld [vmem:[%s4 + $0x10] sm:$0xff]
        %v635 = vld [vmem:[%s4 + $0x18] sm:$0xff]
        %637 = vset.pattern.permute.xlu0 0
        %638 = vperm.xlu0 %637, %v632
        %v639 = vpop.permute.xlu0 %638
        %642 = vset.pattern.permute.xlu0 0
        %643 = vperm.xlu0 %642, %v633
        %v644 = vpop.permute.xlu0 %643
        %647 = vset.pattern.permute.xlu0 0
        %648 = vperm.xlu0 %647, %v634
        %v649 = vpop.permute.xlu0 %648
        %652 = vset.pattern.permute.xlu0 0
        %653 = vperm.xlu0 %652, %v635
        %v654 = vpop.permute.xlu0 %653
        %v660 = vunpack.c.l.b16 %v620
        %v661 = vunpack.c.l.b16 %v621
        %v662 = vunpack.c.l.b16 %v622
        %v663 = vunpack.c.l.b16 %v623
        %v664 = vpack.c.b16 %v661, %v660
        %v665 = vpack.c.b16 %v663, %v662
        %vm666 = vcmask 523264
        %v668 = vsel %vm666, %v664, 0
        %v671 = vsel %vm666, %v665, 0
        %673 = vmatprep.subr.bf16.mxu0 0
        %674 = vmatpush1.bf16.msra.mxu0 0
        %675 = vmatprep.subr.bf16.mxu0 0
        %676 = vmatpush1.bf16.msra.mxu0 0
        %677 = vmatprep.subr.bf16.mxu0 0
        %678 = vmatpush1.bf16.msra.mxu0 0
        %679 = vmatprep.subr.bf16.mxu0 0
        %680 = vmatpush1.bf16.msra.mxu0 0
        %681 = vmatprep.subr.bf16.mxu0 %v631
        %682 = vmatpush1.bf16.msra.mxu0 %v630
        %683 = vmatprep.subr.bf16.mxu0 %v629
        %684 = vmatpush1.bf16.msra.mxu0 %v628
        %685 = vmatprep.subr.bf16.mxu0 %v627
        %686 = vmatpush1.bf16.msra.mxu0 %v626
        %687 = vmatprep.subr.bf16.mxu0 %v625
        %688 = vmatpush1.bf16.msra.mxu0 %v624
        %689 = vmatprep.subr.bf16.mxu0 0
        %690 = vmatpush2.bf16.msra.mxu0 0
        %691 = vmatprep.subr.bf16.mxu0 0
        %692 = vmatpush2.bf16.msra.mxu0 0
        %693 = vmatprep.subr.bf16.mxu0 0
        %694 = vmatpush2.bf16.msra.mxu0 0
        %695 = vmatprep.subr.bf16.mxu0 0
        %696 = vmatpush2.bf16.msra.mxu0 0
        %697 = vmatprep.subr.bf16.mxu0 0
        %698 = vmatpush2.bf16.msra.mxu0 0
        %699 = vmatprep.subr.bf16.mxu0 0
        %700 = vmatpush2.bf16.msra.mxu0 0
        %701 = vmatprep.subr.bf16.mxu0 0
        %702 = vmatpush2.bf16.msra.mxu0 0
        %703 = vmatprep.subr.bf16.mxu0 0
        %704 = vmatpush2.bf16.msra.mxu0 0
        %705 = vmatprep.mubr.bf16.mxu0 0
        %706 = vmatmul.mubr.bf16.gmra.mxu0 %v668
        %v707 = vpop.f32.mrf.mxu0
        %v708 = vadd.f32 %v639, %v707
        %v709 = vpop.f32.mrf.mxu0
        %v710 = vadd.f32 %v639, %v709
        %v711 = vpop.f32.mrf.mxu0
        %v712 = vadd.f32 %v644, %v711
        %v713 = vpop.f32.mrf.mxu0
        %v714 = vadd.f32 %v644, %v713
        %715 = vmatprep.mubr.bf16.mxu0 0
        %716 = vmatmul.mubr.bf16.gmra.mxu0 %v671
        %v717 = vpop.f32.mrf.mxu0
        %v718 = vadd.f32 %v649, %v717
        %v719 = vpop.f32.mrf.mxu0
        %v720 = vadd.f32 %v649, %v719
        %v721 = vpop.f32.mrf.mxu0
        %v722 = vadd.f32 %v654, %v721
        %v723 = vpop.f32.mrf.mxu0
        %v724 = vadd.f32 %v654, %v723
        %725 = vdwg.mxu0
        %v726 = vmax.f32 %v708, 0.0
        %v727 = vmax.f32 %v710, 0.0
        %v728 = vmax.f32 %v712, 0.0
        %v729 = vmax.f32 %v714, 0.0
        %v730 = vmax.f32 %v718, 0.0
        %v731 = vmax.f32 %v720, 0.0
        %v732 = vmax.f32 %v722, 0.0
        %v733 = vmax.f32 %v724, 0.0
        %v734 = vld [vmem:[%s5] sm:$0xff]
        %v735 = vld [vmem:[%s5 + $0x8] sm:$0xff]
        %v736 = vld [vmem:[%s5 + $0x10] sm:$0xff]
        %v737 = vld [vmem:[%s5 + $0x18] sm:$0xff]
        %739 = vset.pattern.permute.xlu0 0
        %740 = vperm.xlu0 %739, %v734
        %v741 = vpop.permute.xlu0 %740
        %744 = vset.pattern.permute.xlu0 0
        %745 = vperm.xlu0 %744, %v735
        %v746 = vpop.permute.xlu0 %745
        %749 = vset.pattern.permute.xlu0 0
        %750 = vperm.xlu0 %749, %v736
        %v751 = vpop.permute.xlu0 %750
        %754 = vset.pattern.permute.xlu0 0
        %755 = vperm.xlu0 %754, %v737
        %v756 = vpop.permute.xlu0 %755
        %v758 = vmul.f32 %v726, %v741
        %v759 = vmul.f32 %v727, %v741
        %v760 = vmul.f32 %v728, %v746
        %v761 = vmul.f32 %v729, %v746
        %v762 = vmul.f32 %v730, %v751
        %v763 = vmul.f32 %v731, %v751
        %v764 = vmul.f32 %v732, %v756
        %v765 = vmul.f32 %v733, %v756
        %v766 = vadd.f32 %v758, %v760
        %v767 = vadd.f32 %v766, %v762
        %v768 = vadd.f32 %v767, %v764
        %v769 = vrot.slane %v768, 4
        %v770 = vadd.f32 %v768, %v769
        %v771 = vrot.slane %v770, 2
        %v772 = vadd.f32 %v770, %v771
        %v773 = vrot.slane %v772, 1
        %v774 = vadd.f32 %v772, %v773
        %v775 = vadd.f32 %v759, %v761
        %v776 = vadd.f32 %v775, %v763
        %v777 = vadd.f32 %v776, %v765
        %v778 = vrot.slane %v777, 4
        %v779 = vadd.f32 %v777, %v778
        %v780 = vrot.slane %v779, 2
        %v781 = vadd.f32 %v779, %v780
        %v782 = vrot.slane %v781, 1
        %v783 = vadd.f32 %v781, %v782
        %s784 = sld [smem:[#allocation2]]
        %v785 = vstv %s784
        %v786 = vadd.f32 %v774, %v785
        %v787 = vadd.f32 %v783, %v785
        %v790 = vcombine.low %v786, %v787
        %v792 = vunpack.c.l.s4 1966171168
        %v793 = vunpack.c.0.s8 %v792
        %v794 = vlaneseq
        %v795 = vshrl.u32 %v794, 7
        %v796 = vsub.s32 %v793, %v795
        %v797 = vrot.slane %v790, %v796
        %v799 = vunpack.c.l.s4 1966171168
        %v800 = vunpack.c.0.s8 %v799
        %v801 = vlaneseq
        %v802 = vshrl.u32 %v801, 7
        %v803 = vsub.s32 %v800, %v802
        %v804 = vrot.slane %v797, %v803
        %v806 = vlaneseq
        %vm807 = vcmp.ge.s32.totalorder %v806, 0
        %vm808 = vcmp.lt.s32.totalorder %v806, 256
        %vm809 = vmand %vm807, %vm808
        %810 = vst.msk [vmem:[%s273] sm:$0x3] %vm809, %v804
        %s811 = sand.u32 %s182, 1
        %s812 = scalar_lea.sflag [#allocation4], %s811
        %s813 = sand.u32 %s182, 1
        %s814 = smul.addr %s813, 2
        %s815 = scalar_lea.vmem [#allocation3], %s814
        // Predicated region
        $region49: #{tpu_custom_call.1} parent=47 // pred_check
          %p816 = pneg %p192
        $region50: #{tpu_custom_call.1} parent=47 // pred_check_branch
          %818 = sbr.rel (%p816) target = $region52
        $region51: #{tpu_custom_call.1} parent=47 // pred_region
          %s819 = smul.u32 2, %s22
          %s821 = ssub.s32 32, 32
          %822 = vsyncadd %s812, %s821
          %s823 = smul.addr %s819, 16
          %s824 = scalar_lea.hbm %s7, %s823
          %s826 = sshll.u32 %s815, 4
          %s827 = int_to_ptr.vmem [resolvable:$true] %s826
          %829 = dma.vmem_to_hbm [thread:$0]  %s827, 32, %s824, %s812
        $region52: #{tpu_custom_call.1} parent=47 // pred_fallthru
          _
      $region48: #{tpu_custom_call.1} parent=5 // pred_fallthru
        _
      %p830 = scmp.le.s32.totalorder 2, %s17
      // Predicated region
      $region53: #{tpu_custom_call.1} parent=5 // pred_check
        %p831 = pneg %p830
      $region54: #{tpu_custom_call.1} parent=5 // pred_check_branch
        %833 = sbr.rel (%p831) target = $region56
      $region55: #{tpu_custom_call.1} parent=5 // pred_region
        %s834 = ssub.s32 %s17, 2
        // Predicated region
        $region57: #{tpu_custom_call.1} parent=55 // pred_check
          %p835 = pneg %p198
        $region58: #{tpu_custom_call.1} parent=55 // pred_check_branch
          %837 = sbr.rel (%p835) target = $region60
        $region59: #{tpu_custom_call.1} parent=55 // pred_region
          %s838 = sand.u32 %s183, 1
          %s839 = scalar_lea.sflag [#allocation4], %s838
          %s840 = sand.u32 %s183, 1
          %s841 = smul.addr %s840, 2
          %s842 = scalar_lea.vmem [#allocation3], %s841
          %843 = dma.done %s839, 32
        $region60: #{tpu_custom_call.1} parent=55 // pred_fallthru
          _
      $region56: #{tpu_custom_call.1} parent=5 // pred_fallthru
        _
    $region6: #{tpu_custom_call.1} parent=1 // loop_footer
      %s21 = sadd.s32 1, %s17
    $region7: #{tpu_custom_call.1} parent=1 // loop_footer_branch
      %16 = sbr.rel target = $region3
    $region8: #{tpu_custom_call.1} parent=1 // loop_exit
      _
    %844 = vsyncpa [#allocation4], 1
    %s845 = scalar_lea.sflag [#allocation4], 1
    %846 = vsyncpa %s845, 1

</llo_original>
